<compile_context>
chip_gen: v6e
topology: v6e:2x2x1
jax: 0.10.0
libtpu: 0.0.40
codegen_flags: <defaults>
</compile_context>

<pallas_src>
import functools

import jax
import jax.numpy as jnp
from jax.experimental import pallas as pl
from jax.experimental.pallas import tpu as pltpu


def _round_up(x, m):
    return (x + m - 1) // m * m


def _pick_tile(dim, cap, align):
    """Largest tile <= cap (multiple of `align`); prefers exact divisors of
    `dim` (no padding / no output slice), falling back to minimal padding."""
    aligned = _round_up(dim, align)
    if aligned <= cap:
        return aligned
    # Prefer exact divisors, but don't shrink below cap//2 (grid-step overhead).
    t = (cap // align) * align
    floor = max(align, (cap // 2 // align) * align)
    while t >= floor:
        if dim % t == 0:
            return t
        t -= align
    n_blocks = -(-dim // cap)
    return _round_up(-(-dim // n_blocks), align)


# --------------------------------------------------------------------------
# Pallas matmul kernels:  (M,K) @ (K,N) + bias[N]  (optional fused ReLU)
# Inputs bf16, accumulation f32, output dtype selectable (bf16 / f32).
# --------------------------------------------------------------------------
def _matmul_bias_kernel_1k(a_ref, b_ref, bias_ref, o_ref, *, activation):
    # Single K step: no accumulator scratch, no init/finalize branches.
    out = jnp.dot(a_ref[...], b_ref[...], preferred_element_type=jnp.float32)
    out = out + bias_ref[...]
    if activation == "relu":
        out = jnp.maximum(out, 0.0)
    o_ref[...] = out.astype(o_ref.dtype)


def _matmul_bias_kernel_acc(a_ref, b_ref, bias_ref, o_ref, acc_ref, *, activation):
    k = pl.program_id(2)

    @pl.when(k == 0)
    def _():
        acc_ref[...] = jnp.zeros_like(acc_ref)

    acc_ref[...] += jnp.dot(a_ref[...], b_ref[...],
                            preferred_element_type=jnp.float32)

    @pl.when(k == pl.num_programs(2) - 1)
    def _():
        out = acc_ref[...] + bias_ref[...]
        if activation == "relu":
            out = jnp.maximum(out, 0.0)
        o_ref[...] = out.astype(o_ref.dtype)


def pallas_matmul_bias(a, b, bias, activation=None, out_dtype=jnp.float32,
                       tm=None, tn=None, tk=None):
    M, K = a.shape
    K2, N = b.shape
    assert K == K2
    # Defaults: M tiles aligned to 8 with divisor preference; K/N to 128 lanes.
    tm = tm if tm is not None else _pick_tile(M, 512, 8)
    tk = tk if tk is not None else _pick_tile(K, 2048, 128)
    tn = tn if tn is not None else _pick_tile(N, 512, 128)
    Mp, Kp, Np = _round_up(M, tm), _round_up(K, tk), _round_up(N, tn)

    a = a.astype(jnp.bfloat16)
    b = b.astype(jnp.bfloat16)           # weights already stored bf16: no copy
    bias = bias.astype(jnp.float32).reshape(1, N)
    # Only pad genuinely ragged dims (K must stay zero-padded for the reduce).
    if (Mp, Kp) != (M, K):
        a = jnp.pad(a, ((0, Mp - M), (0, Kp - K)))
    if (Kp, Np) != (K, N):
        b = jnp.pad(b, ((0, Kp - K), (0, Np - N)))
    if Np != N:
        bias = jnp.pad(bias, ((0, 0), (0, Np - N)))

    nk = Kp // tk
    if nk == 1:
        grid = (Mp // tm, Np // tn)
        kernel = functools.partial(_matmul_bias_kernel_1k, activation=activation)
        in_specs = [pl.BlockSpec((tm, tk), lambda i, j: (i, 0)),
                    pl.BlockSpec((tk, tn), lambda i, j: (0, j)),
                    pl.BlockSpec((1, tn), lambda i, j: (0, j))]
        out_specs = pl.BlockSpec((tm, tn), lambda i, j: (i, j))
        scratch = []
        dims = ("parallel", "parallel")
    else:
        grid = (Mp // tm, Np // tn, nk)
        kernel = functools.partial(_matmul_bias_kernel_acc, activation=activation)
        in_specs = [pl.BlockSpec((tm, tk), lambda i, j, k: (i, k)),
                    pl.BlockSpec((tk, tn), lambda i, j, k: (k, j)),
                    pl.BlockSpec((1, tn), lambda i, j, k: (0, j))]
        out_specs = pl.BlockSpec((tm, tn), lambda i, j, k: (i, j))
        scratch = [pltpu.VMEM((tm, tn), jnp.float32)]
        dims = ("parallel", "parallel", "arbitrary")

    out = pl.pallas_call(
        kernel,
        out_shape=jax.ShapeDtypeStruct((Mp, Np), out_dtype),
        grid_spec=pltpu.PrefetchScalarGridSpec(
            num_scalar_prefetch=0,
            grid=grid,
            in_specs=in_specs,
            out_specs=out_specs,
            scratch_shapes=scratch,
        ),
        compiler_params=pltpu.CompilerParams(
            dimension_semantics=dims,
            vmem_limit_bytes=32 * 1024 * 1024),
    )(a, b, bias)
    if (Mp, Np) != (M, N):
        out = out[:M, :N]
    return out


# --------------------------------------------------------------------------
# Pallas MaxPool2d(2) kernel (NHWC), single input DMA per sample.
# The wrapper reshapes (free, contiguous) to (N, Ho, 2, Wo, 2*C); inside the
# kernel the H-phases are an outer-dim index and the W-phases are the two
# lane-dim halves (same channel c lives at lane c and lane C + c).
# ReLU is already fused into the conv epilogue (relu∘maxpool == maxpool∘relu).
# --------------------------------------------------------------------------
def _maxpool2_kernel(x_ref, o_ref):
    c = o_ref.shape[-1]
    v = x_ref[...]                                      # (1, Ho, 2, Wo, 2C)
    hmax = jnp.maximum(v[:, :, 0, :, :], v[:, :, 1, :, :])   # (1, Ho, Wo, 2C)
    o_ref[...] = jnp.maximum(hmax[..., :c], hmax[..., c:])   # (1, Ho, Wo, C)


def maxpool2(x):
    N, H, W, C = x.shape
    Ho, Wo = H // 2, W // 2
    if (H, W) != (2 * Ho, 2 * Wo):
        x = x[:, :2 * Ho, :2 * Wo, :]
    x5 = x.reshape(N, Ho, 2, Wo, 2 * C)        # contiguous regroup: no copy
    return pl.pallas_call(
        _maxpool2_kernel,
        out_shape=jax.ShapeDtypeStruct((N, Ho, Wo, C), x.dtype),
        grid=(N,),
        in_specs=[pl.BlockSpec((1, Ho, 2, Wo, 2 * C),
                               lambda n: (n, 0, 0, 0, 0))],
        out_specs=pl.BlockSpec((1, Ho, Wo, C), lambda n: (n, 0, 0, 0)),
        compiler_params=pltpu.CompilerParams(
            dimension_semantics=("parallel",)),
    )(x5)


# --------------------------------------------------------------------------
# Conv2d (+ fused ReLU) = fused patch extraction + Pallas matmul (bf16 out)
# --------------------------------------------------------------------------
def conv2d_relu(x, w, b, stride, pad):
    """x: NHWC, w: (O, Cin, kh, kw) PyTorch layout (bf16), b: (O,)."""
    N = x.shape[0]
    O, Cin, kh, kw = w.shape
    x = x.astype(jnp.bfloat16)
    patches = jax.lax.conv_general_dilated_patches(
        x, filter_shape=(kh, kw), window_strides=(stride, stride),
        padding=((pad, pad), (pad, pad)),
        dimension_numbers=("NHWC", "HWIO", "NHWC"))
    _, Ho, Wo, KF = patches.shape            # KF = Cin*kh*kw, ordered (c, i, j)
    cols = patches.reshape(N * Ho * Wo, KF)
    w_mat = w.reshape(O, KF).T               # (Cin*kh*kw, O), matches ordering
    y = pallas_matmul_bias(cols, w_mat, b, activation="relu",
                           out_dtype=jnp.bfloat16)
    return y.reshape(N, Ho, Wo, O)


def _check_conv_patch_ordering():
    """One-off numeric check vs lax.conv_general_dilated: validates the
    channel-major (C, kh, kw) patch ordering assumed when flattening the
    PyTorch (O, Cin, kh, kw) weights (non-square filter to catch axis swaps)."""
    k = jax.random.PRNGKey(1)
    kx, kw, kb = jax.random.split(k, 3)
    x = jax.random.normal(kx, (1, 16, 20, 3), jnp.float32)            # NHWC
    w = (jax.random.normal(kw, (8, 3, 3, 5), jnp.float32) / 6.7
         ).astype(jnp.bfloat16)                                       # (O,C,kh,kw)
    b = jax.random.normal(kb, (8,), jnp.float32) * 0.1
    got = conv2d_relu(x, w, b, stride=2, pad=1).astype(jnp.float32)
    ref = jax.lax.conv_general_dilated(
        x.astype(jnp.bfloat16), jnp.transpose(w, (2, 3, 1, 0)),
        window_strides=(2, 2), padding=((1, 1), (1, 1)),
        dimension_numbers=("NHWC", "HWIO", "NHWC"),
        preferred_element_type=jnp.float32)
    ref = jnp.maximum(ref + b[None, None, None, :], 0.0)
    assert jnp.allclose(got, ref, atol=5e-2, rtol=5e-2), (
        "conv patch ordering mismatch vs lax.conv_general_dilated")


# --------------------------------------------------------------------------
# AlexNet parameters (deterministic synthetic init; weights stored in bf16)
# --------------------------------------------------------------------------
def init_params(key, output_dim):
    ks = jax.random.split(key, 12)

    def conv_w(k, o, c, kh, kw):
        w = jax.random.normal(k, (o, c, kh, kw), jnp.float32)
        return (w / jnp.sqrt(float(c * kh * kw))).astype(jnp.bfloat16)

    def lin_w(k, i, o):
        w = jax.random.normal(k, (i, o), jnp.float32)
        return (w / jnp.sqrt(float(i))).astype(jnp.bfloat16)

    def bias(k, n):
        return jax.random.normal(k, (n,), jnp.float32) * 0.01

    return {
        "c1_w": conv_w(ks[0], 64, 3, 12, 12), "c1_b": bias(ks[1], 64),
        "c2_w": conv_w(ks[2], 192, 64, 3, 3), "c2_b": bias(ks[3], 192),
        "c3_w": conv_w(ks[4], 256, 192, 3, 3), "c3_b": bias(ks[5], 256),
        "f1_w": lin_w(ks[6], 256 * 3 * 3, 4096), "f1_b": bias(ks[7], 4096),
        "f2_w": lin_w(ks[8], 4096, 4096), "f2_b": bias(ks[9], 4096),
        "f3_w": lin_w(ks[10], 4096, output_dim), "f3_b": bias(ks[11], output_dim),
    }


def alexnet_forward(x_nchw, params):
    N = x_nchw.shape[0]
    x = jnp.transpose(x_nchw, (0, 2, 3, 1))            # NCHW -> NHWC

    # features: Conv2d -> MaxPool2d(2) -> ReLU  (ReLU fused into conv epilogue;
    # relu(maxpool(z)) == maxpool(relu(z)))
    x = conv2d_relu(x, params["c1_w"], params["c1_b"], stride=4, pad=1)
    x = maxpool2(x)
    x = conv2d_relu(x, params["c2_w"], params["c2_b"], stride=1, pad=1)
    x = maxpool2(x)
    x = conv2d_relu(x, params["c3_w"], params["c3_b"], stride=1, pad=1)
    x = maxpool2(x)                                     # (N, 3, 3, 256) bf16

    # h = torch's x.view(N, -1) on NCHW features
    h = jnp.transpose(x, (0, 3, 1, 2)).reshape(N, -1)   # (N, 2304)

    # classifier (Dropout = identity in eval mode).  Full-K single-step tiles:
    # f1: (16x2304)@(2304x1024) x4 j-blocks, f2: (16x4096)@(4096x1024) x4.
    # tn=1024 keeps 4 parallel N-blocks for the two v7x TensorCores.
    # TODO(synk): P10 cross-call weight prefetch to hide each layer's first
    #             weight-tile DMA behind the previous layer.
    z = pallas_matmul_bias(h, params["f1_w"], params["f1_b"], activation="relu",
                           out_dtype=jnp.bfloat16,
                           tn=1024, tk=params["f1_w"].shape[0])
    z = pallas_matmul_bias(z, params["f2_w"], params["f2_b"], activation="relu",
                           out_dtype=jnp.bfloat16,
                           tn=1024, tk=params["f2_w"].shape[0])
    z = pallas_matmul_bias(z, params["f3_w"], params["f3_b"], activation=None,
                           out_dtype=jnp.float32,
                           tk=params["f3_w"].shape[0])
    return z, h.astype(jnp.float32)


if __name__ == "__main__":
    # Correctness guard flagged in review: patch ordering vs XLA conv.
    _check_conv_patch_ordering()

    # Smallest spatial size whose feature map is 3x3 (required by the 2304-dim
    # classifier input) is 102x102.
    key = jax.random.PRNGKey(0)
    k_x, k_p = jax.random.split(key)
    batch, output_dim = 2, 10
    x = jax.random.normal(k_x, (batch, 3, 102, 102), jnp.float32)
    params = init_params(k_p, output_dim)

    fwd = jax.jit(alexnet_forward)
    logits, h = fwd(x, params)
    jax.block_until_ready((logits, h))

    assert logits.shape == (batch, output_dim), logits.shape
    assert h.shape == (batch, 256 * 3 * 3), h.shape
    assert logits.dtype == jnp.float32
    print("KERNEL_OK")
</pallas_src>

<mosaic_0001>
module attributes {stable_mosaic.version = 11 : i64} {
  func.func @_matmul_bias_kernel_1k(%arg0: i32, %arg1: i32, %arg2: memref<72x128xbf16, #tpu.memory_space<vmem>>, %arg3: memref<128x128xbf16, #tpu.memory_space<vmem>>, %arg4: memref<1x128xf32, #tpu.memory_space<vmem>>, %arg5: memref<72x128xbf16, #tpu.memory_space<vmem>>) attributes {dimension_semantics = [#tpu.dimension_semantics<parallel>, #tpu.dimension_semantics<parallel>], iteration_bounds = array<i64: 1, 1>, scalar_prefetch = 0 : i64, scratch_operands = 0 : i64, tpu.core_type = #tpu.core_type<tc>, window_params = [{transform_indices = @transform_0, window_bounds = array<i64: 72, 128>}, {transform_indices = @transform_1, window_bounds = array<i64: 128, 128>}, {transform_indices = @transform_2, window_bounds = array<i64: 1, 128>}, {transform_indices = @transform_3, window_bounds = array<i64: 72, 128>}]} {
    %c0 = arith.constant 0 : index
    %c0_0 = arith.constant 0 : index
    %0 = vector.load %arg2[%c0, %c0_0] : memref<72x128xbf16, #tpu.memory_space<vmem>>, vector<72x128xbf16>
    %c0_1 = arith.constant 0 : index
    %c0_2 = arith.constant 0 : index
    %1 = vector.load %arg3[%c0_1, %c0_2] : memref<128x128xbf16, #tpu.memory_space<vmem>>, vector<128x128xbf16>
    %cst = arith.constant dense<0.000000e+00> : vector<72x128xf32>
    %2 = tpu.matmul %0, %1, %cst {dimension_numbers = #tpu.dot_dimension_numbers<[1], [0], [0], [1], [0, 0, 1, 1], [], []>} : vector<72x128xbf16>, vector<128x128xbf16>, vector<72x128xf32> -> vector<72x128xf32>
    %c0_3 = arith.constant 0 : index
    %c0_4 = arith.constant 0 : index
    %3 = vector.load %arg4[%c0_3, %c0_4] : memref<1x128xf32, #tpu.memory_space<vmem>>, vector<1x128xf32>
    %4 = vector.broadcast %3 : vector<1x128xf32> to vector<72x128xf32>
    %5 = arith.addf %2, %4 : vector<72x128xf32>
    %cst_5 = arith.constant 0.000000e+00 : f32
    %6 = vector.broadcast %cst_5 : f32 to vector<72x128xf32>
    %7 = arith.maximumf %5, %6 : vector<72x128xf32>
    %8 = arith.truncf %7 : vector<72x128xf32> to vector<72x128xbf16>
    %c0_6 = arith.constant 0 : index
    %c0_7 = arith.constant 0 : index
    %9 = vector.load %arg5[%c0_6, %c0_7] : memref<72x128xbf16, #tpu.memory_space<vmem>>, vector<72x128xbf16>
    tpu.vector_store %arg5[%c0_6, %c0_7], %8 {strides = array<i32>} : memref<72x128xbf16, #tpu.memory_space<vmem>>, vector<72x128xbf16>,
    return
  }
  func.func @transform_0(%arg0: i32, %arg1: i32) -> (i32, i32) {
    %c0_i32 = arith.constant 0 : i32
    %c0_i32_0 = arith.constant 0 : i32
    return %arg0, %c0_i32 : i32, i32
  }
  func.func @transform_1(%arg0: i32, %arg1: i32) -> (i32, i32) {
    %c0_i32 = arith.constant 0 : i32
    %c0_i32_0 = arith.constant 0 : i32
    return %c0_i32, %arg1 : i32, i32
  }
  func.func @transform_2(%arg0: i32, %arg1: i32) -> (i32, i32) {
    %c0_i32 = arith.constant 0 : i32
    %c0_i32_0 = arith.constant 0 : i32
    return %c0_i32, %arg1 : i32, i32
  }
  func.func @transform_3(%arg0: i32, %arg1: i32) -> (i32, i32) {
    %c0_i32 = arith.constant 0 : i32
    return %arg0, %arg1 : i32, i32
  }
}

</mosaic_0001>

<llo_original>
// kernel: tpu_custom_call.1
$region0: #{tpu_custom_call.1}
  #allocation0 [shape = 'u32[]', space=smem, size = 0x4, offset = 0x4, fixed_abs, tag = 'smem constant byte address 0x4 - core index']
  #allocation1 [shape = 'u32[144,128]{1,0:T(1,128)}', space=vmem, size = 0x12000, scoped, tag = 'internal scratch']
  %s0 = inlined_call_operand.hbm [shape: bf16[72,128], index: 0, kind: input, shape index: {}]
  %s1 = inlined_call_operand.hbm [shape: bf16[128,128], index: 1, kind: input, shape index: {}]
  %s2 = inlined_call_operand.vmem [shape: f32[1,128], index: 2, kind: input, shape index: {}]
  %s3 = inlined_call_operand.hbm [shape: bf16[72,128], index: 3, kind: output, shape index: {}]
  %s4 = sld [smem:[#allocation0]]
  $region30: #{tpu_custom_call.1} parent=0
    _
  %s6 = ssub.s32 1, %s4
  %s7 = scalar_select 0, %s6, %s4
  $region1: #{tpu_custom_call.1} parent=0
    #allocation2 [shape = 'u8[18432]{0}', space=vmem, size = 0x4800, scoped, tag = 'input window, operand 0, single buffered']
    #allocation3 [shape = 's32[1]{0}', space=sflag, size = 0x4, scoped, tag = 'scoped memory for tpu_custom_call.1']
    #allocation4 [shape = 's32[1]{0}', space=sflag, size = 0x4, scoped, tag = 'scoped memory for tpu_custom_call.1']
    #allocation5 [shape = 'u8[32768]{0}', space=vmem, size = 0x8000, scoped, tag = 'input window, operand 1, single buffered']
    #allocation6 [shape = 's32[1]{0}', space=sflag, size = 0x4, scoped, tag = 'scoped memory for tpu_custom_call.1']
    #allocation7 [shape = 'u8[18432]{0}', space=vmem, size = 0x4800, scoped, tag = 'output window, operand 0, single buffered']
    %8 = vsyncpa [#allocation3], 0
    %9 = vsyncpa [#allocation6], 0
    %10 = vsyncpa [#allocation4], 0
    // Predicated region
    $region2: #{tpu_custom_call.1} parent=1 // pred_check
      _
    $region3: #{tpu_custom_call.1} parent=1 // pred_check_branch
      %12 = sbr.rel (0) target = $region5
    $region4: #{tpu_custom_call.1} parent=1 // pred_region
      %s14 = ssub.s32 576, 576
      %15 = vsyncadd [#allocation3], %s14
      %s16 = sshll.u32 [#allocation2], 4
      %s17 = int_to_ptr.vmem [resolvable:$true] %s16
      %22 = dma.hbm_to_vmem [thread:$0]  %s0, 576, %s17, [#allocation3], 64, 64, 4
    $region5: #{tpu_custom_call.1} parent=1 // pred_fallthru
      _
    // Predicated region
    $region6: #{tpu_custom_call.1} parent=1 // pred_check
      _
    $region7: #{tpu_custom_call.1} parent=1 // pred_check_branch
      %24 = sbr.rel (0) target = $region9
    $region8: #{tpu_custom_call.1} parent=1 // pred_region
      %s26 = ssub.s32 1024, 1024
      %27 = vsyncadd [#allocation6], %s26
      %s28 = sshll.u32 [#allocation5], 4
      %s29 = int_to_ptr.vmem [resolvable:$true] %s28
      %34 = dma.hbm_to_vmem [thread:$0]  %s1, 1024, %s29, [#allocation6], 64, 64, 4
    $region9: #{tpu_custom_call.1} parent=1 // pred_fallthru
      _
    // Predicated region
    $region10: #{tpu_custom_call.1} parent=1 // pred_check
      _
    $region11: #{tpu_custom_call.1} parent=1 // pred_check_branch
      %36 = sbr.rel (0) target = $region13
    $region12: #{tpu_custom_call.1} parent=1 // pred_region
      _
    $region13: #{tpu_custom_call.1} parent=1 // pred_fallthru
      _
    // Predicated region
    $region14: #{tpu_custom_call.1} parent=1 // pred_check
      _
    $region15: #{tpu_custom_call.1} parent=1 // pred_check_branch
      %38 = sbr.rel (0) target = $region17
    $region16: #{tpu_custom_call.1} parent=1 // pred_region
      %39 = dma.done [#allocation3], 576
    $region17: #{tpu_custom_call.1} parent=1 // pred_fallthru
      _
    // Predicated region
    $region18: #{tpu_custom_call.1} parent=1 // pred_check
      _
    $region19: #{tpu_custom_call.1} parent=1 // pred_check_branch
      %41 = sbr.rel (0) target = $region21
    $region20: #{tpu_custom_call.1} parent=1 // pred_region
      %42 = dma.done [#allocation6], 1024
    $region21: #{tpu_custom_call.1} parent=1 // pred_fallthru
      _
    %v44 = vld [vmem:[#allocation2] sm:$0xf]
    %v45 = vld [vmem:[#allocation2 + $0x4] sm:$0xf]
    %v46 = vld [vmem:[#allocation2 + $0x8] sm:$0xf]
    %v47 = vld [vmem:[#allocation2 + $0xc] sm:$0xf]
    %v48 = vld [vmem:[#allocation2 + $0x10] sm:$0xf]
    %v49 = vld [vmem:[#allocation2 + $0x14] sm:$0xf]
    %v50 = vld [vmem:[#allocation2 + $0x18] sm:$0xf]
    %v51 = vld [vmem:[#allocation2 + $0x1c] sm:$0xf]
    %v52 = vld [vmem:[#allocation2 + $0x20] sm:$0xf]
    %v53 = vld [vmem:[#allocation5] sm:$0xf]
    %v54 = vld [vmem:[#allocation5 + $0x4] sm:$0xf]
    %v55 = vld [vmem:[#allocation5 + $0x8] sm:$0xf]
    %v56 = vld [vmem:[#allocation5 + $0xc] sm:$0xf]
    %v57 = vld [vmem:[#allocation5 + $0x10] sm:$0xf]
    %v58 = vld [vmem:[#allocation5 + $0x14] sm:$0xf]
    %v59 = vld [vmem:[#allocation5 + $0x18] sm:$0xf]
    %v60 = vld [vmem:[#allocation5 + $0x1c] sm:$0xf]
    %v61 = vld [vmem:[#allocation5 + $0x20] sm:$0xf]
    %v62 = vld [vmem:[#allocation5 + $0x24] sm:$0xf]
    %v63 = vld [vmem:[#allocation5 + $0x28] sm:$0xf]
    %v64 = vld [vmem:[#allocation5 + $0x2c] sm:$0xf]
    %v65 = vld [vmem:[#allocation5 + $0x30] sm:$0xf]
    %v66 = vld [vmem:[#allocation5 + $0x34] sm:$0xf]
    %v67 = vld [vmem:[#allocation5 + $0x38] sm:$0xf]
    %v68 = vld [vmem:[#allocation5 + $0x3c] sm:$0xf]
    %v69 = vld [vmem:[%s2] sm:$0x1]
    %v71 = vlaneseq
    %v72 = vshrl.u32 %v71, 7
    %v73 = vsub.s32 0, %v72
    %v74 = vrot.slane %v69, %v73
    %v85 = vunpack.c.l.b16 %v44
    %v86 = vunpack.c.l.b16 %v45
    %v87 = vunpack.c.l.b16 %v46
    %v88 = vunpack.c.l.b16 %v47
    %v89 = vunpack.c.l.b16 %v48
    %v90 = vunpack.c.l.b16 %v49
    %v91 = vunpack.c.l.b16 %v50
    %v92 = vunpack.c.l.b16 %v51
    %v93 = vunpack.c.l.b16 %v52
    %v94 = vpack.c.b16 %v86, %v85
    %v95 = vpack.c.b16 %v88, %v87
    %v96 = vpack.c.b16 %v90, %v89
    %v97 = vpack.c.b16 %v92, %v91
    %v98 = vpack.c.b16 %v93, %v93
    %v120 = vunpack.c.l.b16 %v53
    %v121 = vunpack.c.l.b16 %v54
    %v122 = vunpack.c.l.b16 %v55
    %v123 = vunpack.c.l.b16 %v56
    %v124 = vunpack.c.l.b16 %v57
    %v125 = vunpack.c.l.b16 %v58
    %v126 = vunpack.c.l.b16 %v59
    %v127 = vunpack.c.l.b16 %v60
    %v128 = vunpack.c.l.b16 %v61
    %v129 = vunpack.c.l.b16 %v62
    %v130 = vunpack.c.l.b16 %v63
    %v131 = vunpack.c.l.b16 %v64
    %v132 = vunpack.c.l.b16 %v65
    %v133 = vunpack.c.l.b16 %v66
    %v134 = vunpack.c.l.b16 %v67
    %v135 = vunpack.c.l.b16 %v68
    %v136 = vpack.c.b16 %v121, %v120
    %v137 = vpack.c.b16 %v123, %v122
    %v138 = vpack.c.b16 %v125, %v124
    %v139 = vpack.c.b16 %v127, %v126
    %v140 = vpack.c.b16 %v129, %v128
    %v141 = vpack.c.b16 %v131, %v130
    %v142 = vpack.c.b16 %v133, %v132
    %v143 = vpack.c.b16 %v135, %v134
    %152 = vmatprep.subr.bf16.mxu0 0
    %153 = vmatpush1.bf16.msra.mxu0 %v143
    %154 = vmatprep.subr.bf16.mxu0 0
    %155 = vmatpush1.bf16.msra.mxu0 %v142
    %156 = vmatprep.subr.bf16.mxu0 0
    %157 = vmatpush1.bf16.msra.mxu0 %v141
    %158 = vmatprep.subr.bf16.mxu0 0
    %159 = vmatpush1.bf16.msra.mxu0 %v140
    %160 = vmatprep.subr.bf16.mxu0 0
    %161 = vmatpush1.bf16.msra.mxu0 %v139
    %162 = vmatprep.subr.bf16.mxu0 0
    %163 = vmatpush1.bf16.msra.mxu0 %v138
    %164 = vmatprep.subr.bf16.mxu0 0
    %165 = vmatpush1.bf16.msra.mxu0 %v137
    %166 = vmatprep.subr.bf16.mxu0 0
    %167 = vmatpush1.bf16.msra.mxu0 %v136
    %168 = vmatprep.subr.bf16.mxu0 0
    %169 = vmatpush2.bf16.msra.mxu0 0
    %170 = vmatprep.subr.bf16.mxu0 0
    %171 = vmatpush2.bf16.msra.mxu0 0
    %172 = vmatprep.subr.bf16.mxu0 0
    %173 = vmatpush2.bf16.msra.mxu0 0
    %174 = vmatprep.subr.bf16.mxu0 0
    %175 = vmatpush2.bf16.msra.mxu0 0
    %176 = vmatprep.subr.bf16.mxu0 0
    %177 = vmatpush2.bf16.msra.mxu0 0
    %178 = vmatprep.subr.bf16.mxu0 0
    %179 = vmatpush2.bf16.msra.mxu0 0
    %180 = vmatprep.subr.bf16.mxu0 0
    %181 = vmatpush2.bf16.msra.mxu0 0
    %182 = vmatprep.subr.bf16.mxu0 0
    %183 = vmatpush2.bf16.msra.mxu0 0
    %184 = vmatprep.mubr.bf16.mxu0 0
    %185 = vmatmul.mubr.bf16.gmra.mxu0 %v94
    %v186 = vpop.f32.mrf.mxu0
    %v187 = vadd.f32 %v74, %v186
    %v188 = vpop.f32.mrf.mxu0
    %v189 = vpop.f32.mrf.mxu0
    %v190 = vadd.f32 %v74, %v189
    %v191 = vpop.f32.mrf.mxu0
    %192 = vmatprep.mubr.bf16.mxu0 0
    %193 = vmatmul.mubr.bf16.gmra.mxu0 %v95
    %v194 = vpop.f32.mrf.mxu0
    %v195 = vadd.f32 %v74, %v194
    %v196 = vpop.f32.mrf.mxu0
    %v197 = vpop.f32.mrf.mxu0
    %v198 = vadd.f32 %v74, %v197
    %v199 = vpop.f32.mrf.mxu0
    %200 = vmatprep.mubr.bf16.mxu0 0
    %201 = vmatmul.mubr.bf16.gmra.mxu0 %v96
    %v202 = vpop.f32.mrf.mxu0
    %v203 = vadd.f32 %v74, %v202
    %v204 = vpop.f32.mrf.mxu0
    %v205 = vpop.f32.mrf.mxu0
    %v206 = vadd.f32 %v74, %v205
    %v207 = vpop.f32.mrf.mxu0
    %208 = vmatprep.mubr.bf16.mxu0 0
    %209 = vmatmul.mubr.bf16.gmra.mxu0 %v97
    %v210 = vpop.f32.mrf.mxu0
    %v211 = vadd.f32 %v74, %v210
    %v212 = vpop.f32.mrf.mxu0
    %v213 = vpop.f32.mrf.mxu0
    %v214 = vadd.f32 %v74, %v213
    %v215 = vpop.f32.mrf.mxu0
    %216 = vmatprep.mubr.bf16.mxu0 0
    %217 = vmatmul.mubr.bf16.gmra.mxu0 %v98
    %v218 = vpop.f32.mrf.mxu0
    %v219 = vadd.f32 %v74, %v218
    %v220 = vpop.f32.mrf.mxu0
    %v221 = vpop.f32.mrf.mxu0
    %v222 = vpop.f32.mrf.mxu0
    %223 = vdwg.mxu0
    %v224 = vmax.f32 %v187, 0.0
    %v225 = vmax.f32 %v190, 0.0
    %v226 = vmax.f32 %v195, 0.0
    %v227 = vmax.f32 %v198, 0.0
    %v228 = vmax.f32 %v203, 0.0
    %v229 = vmax.f32 %v206, 0.0
    %v230 = vmax.f32 %v211, 0.0
    %v231 = vmax.f32 %v214, 0.0
    %v232 = vmax.f32 %v219, 0.0
    %v233 = vpack.c.bf16 %v225, %v224
    %v234 = vpack.c.bf16 %v227, %v226
    %v235 = vpack.c.bf16 %v229, %v228
    %v236 = vpack.c.bf16 %v231, %v230
    %v237 = vpack.c.bf16 %v232, %v232
    %v243 = vunpack.c.l.b16 %v233
    %v244 = vunpack.c.h.b16 %v233
    %v245 = vunpack.c.l.b16 %v234
    %v246 = vunpack.c.h.b16 %v234
    %v247 = vunpack.c.l.b16 %v235
    %v248 = vunpack.c.h.b16 %v235
    %v249 = vunpack.c.l.b16 %v236
    %v250 = vunpack.c.h.b16 %v236
    %v251 = vunpack.c.l.b16 %v237
    %v252 = vpack.c.b16 %v243, %v243
    %v253 = vpack.c.b16 %v244, %v244
    %v254 = vpack.c.b16 %v245, %v245
    %v255 = vpack.c.b16 %v246, %v246
    %v256 = vpack.c.b16 %v247, %v247
    %v257 = vpack.c.b16 %v248, %v248
    %v258 = vpack.c.b16 %v249, %v249
    %v259 = vpack.c.b16 %v250, %v250
    %v260 = vpack.c.b16 %v251, %v251
    %270 = vst [vmem:[#allocation7] sm:$0xf] %v252
    %271 = vst [vmem:[#allocation7 + $0x4] sm:$0xf] %v253
    %272 = vst [vmem:[#allocation7 + $0x8] sm:$0xf] %v254
    %273 = vst [vmem:[#allocation7 + $0xc] sm:$0xf] %v255
    %274 = vst [vmem:[#allocation7 + $0x10] sm:$0xf] %v256
    %275 = vst [vmem:[#allocation7 + $0x14] sm:$0xf] %v257
    %276 = vst [vmem:[#allocation7 + $0x18] sm:$0xf] %v258
    %277 = vst [vmem:[#allocation7 + $0x1c] sm:$0xf] %v259
    %278 = vst [vmem:[#allocation7 + $0x20] sm:$0xf] %v260
    // Predicated region
    $region22: #{tpu_custom_call.1} parent=1 // pred_check
      _
    $region23: #{tpu_custom_call.1} parent=1 // pred_check_branch
      %280 = sbr.rel (0) target = $region25
    $region24: #{tpu_custom_call.1} parent=1 // pred_region
      %s282 = ssub.s32 576, 576
      %283 = vsyncadd [#allocation4], %s282
      %s284 = sshll.u32 [#allocation7], 4
      %s285 = int_to_ptr.vmem [resolvable:$true] %s284
      %290 = dma.vmem_to_hbm [thread:$0]  %s285, 576, %s3, [#allocation4], 64, 64, 4
    $region25: #{tpu_custom_call.1} parent=1 // pred_fallthru
      _
    // Predicated region
    $region26: #{tpu_custom_call.1} parent=1 // pred_check
      _
    $region27: #{tpu_custom_call.1} parent=1 // pred_check_branch
      %292 = sbr.rel (0) target = $region29
    $region28: #{tpu_custom_call.1} parent=1 // pred_region
      %293 = dma.done [#allocation4], 576
    $region29: #{tpu_custom_call.1} parent=1 // pred_fallthru
      _
    %294 = vsyncpa [#allocation3], 1
    %295 = vsyncpa [#allocation6], 1
    %296 = vsyncpa [#allocation4], 1

</llo_original>
